<compile_context>
chip_gen: v6e
topology: v6e:2x2x1
jax: 0.10.0
libtpu: 0.0.40
codegen_flags: <defaults>
</compile_context>

<pallas_src>
import numpy as np
import jax
import jax.numpy as jnp
from jax.experimental import pallas as pl
from jax.experimental.pallas import tpu as pltpu


def _ceil_to(x, m):
    return ((x + m - 1) // m) * m


# ----------------------------------------------------------------------------
# Kernel 1: dense RGCN with relations folded into the contraction
#   adj_flat (N_pad, K_pad) bf16, adj_flat[i, r*N_pad + j] = A_r[i, j]
#   w_flat   (K_pad, D_pad) bf16, w_flat[r*N_pad + j, :]   = W_r[j, :]
# Output block index is constant over the K axis (reduction last in grid),
# so it stays VMEM-resident and we accumulate straight into it (no scratch).
# ----------------------------------------------------------------------------
def rgcn_kernel(adj_ref, w_ref, root_ref, bias_ref, out_ref):
    k = pl.program_id(1)

    @pl.when(k == 0)
    def _():
        out_ref[...] = root_ref[...] + bias_ref[...]

    out_ref[...] += jnp.dot(adj_ref[...], w_ref[...],
                            preferred_element_type=jnp.float32)


def rgcn_forward(adj_flat, w_flat, root, bias, *, tm=128, tk=256):
    n_pad, k_pad = adj_flat.shape
    d_pad = w_flat.shape[1]
    tm = min(tm, n_pad)
    tk = min(tk, k_pad)
    assert n_pad % tm == 0 and k_pad % tk == 0
    return pl.pallas_call(
        rgcn_kernel,
        out_shape=jax.ShapeDtypeStruct((n_pad, d_pad), jnp.float32),
        grid=(n_pad // tm, k_pad // tk),
        in_specs=[
            pl.BlockSpec((tm, tk), lambda i, k: (i, k)),
            pl.BlockSpec((tk, d_pad), lambda i, k: (k, 0)),
            pl.BlockSpec((tm, d_pad), lambda i, k: (i, 0)),
            pl.BlockSpec((1, d_pad), lambda i, k: (0, 0)),
        ],
        out_specs=pl.BlockSpec((tm, d_pad), lambda i, k: (i, 0)),
        compiler_params=pltpu.CompilerParams(
            # row tiles parallel (v7x megacore), merged-relation K reduction last
            dimension_semantics=("parallel", "arbitrary"),
            vmem_limit_bytes=48 * 1024 * 1024),
    )(adj_flat, w_flat, root, bias)


# ----------------------------------------------------------------------------
# Kernel 2: self-attention user embedding + tiled movie scoring
#   h      (B, S, D_pad) bf16 padded seed features (padded rows zeroed)
#   mask   (B, S)        f32
#   a      (D_pad, Da)   bf16,  bt (1, Da) f32  (SelfAttentionLayer params)
#   movie  (M_pad, D_pad) bf16 streamed in (TMOV, D_pad) tiles
#   outb   (1, M_pad)    f32
#   scores (B, M_pad)    f32, written as lane-dense (B, TMOV) tiles
# ----------------------------------------------------------------------------
def user_score_kernel(h_ref, mask_ref, a_ref, bt_ref, movie_ref, outb_ref,
                      scores_ref, u_ref):
    j = pl.program_id(0)

    @pl.when(j == 0)
    def _():
        B, S, D = h_ref.shape
        h = h_ref[...]                                   # bf16 (B, S, D)
        mask = mask_ref[...]                             # f32  (B, S)
        # e = tanh(h @ a) @ b ; final width-1 matmul replaced by a VPU
        # multiply + reduce so the MXU is not wasted on an N=1 output.
        t = jnp.tanh(jnp.dot(h.reshape(B * S, D), a_ref[...],
                             preferred_element_type=jnp.float32))
        e = jnp.sum(t * bt_ref[...], axis=-1, keepdims=True).reshape(B, S)
        # masked softmax; an empty seed set -> all-zero attention (zeros(dim))
        e = jnp.where(mask > 0, e, jnp.float32(-1e30))
        m = jnp.max(e, axis=-1, keepdims=True)
        p = jnp.exp(e - m) * mask
        denom = jnp.sum(p, axis=-1, keepdims=True)
        attn = p / jnp.where(denom > 0, denom, jnp.float32(1.0))
        # u = attn @ h ; tiny here (B*S*D small) so a VPU/XLU weighted sum is
        # fine — switch to a batched dot_general at production batch/seed sizes.
        u_ref[...] = jnp.sum(attn[:, :, None] * h.astype(jnp.float32), axis=1)

    # scores tile: u @ movie_tile.T + bias_tile  (lane-dense 128-wide store)
    scores_ref[...] = jax.lax.dot_general(
        u_ref[...].astype(movie_ref.dtype), movie_ref[...],
        (((1,), (1,)), ((), ())),
        preferred_element_type=jnp.float32) + outb_ref[...]


def user_scores(h, mask, a, bt, movie, out_bias, *, tmov=128):
    B, S, D = h.shape
    Da = a.shape[1]
    M = movie.shape[0]
    tmov = min(tmov, M)
    assert M % tmov == 0
    return pl.pallas_call(
        user_score_kernel,
        out_shape=jax.ShapeDtypeStruct((B, M), jnp.float32),
        grid=(M // tmov,),
        in_specs=[
            pl.BlockSpec((B, S, D), lambda j: (0, 0, 0)),
            pl.BlockSpec((B, S), lambda j: (0, 0)),
            pl.BlockSpec((D, Da), lambda j: (0, 0)),
            pl.BlockSpec((1, Da), lambda j: (0, 0)),
            pl.BlockSpec((tmov, D), lambda j: (j, 0)),
            pl.BlockSpec((1, tmov), lambda j: (0, j)),
        ],
        out_specs=pl.BlockSpec((B, tmov), lambda j: (0, j)),
        scratch_shapes=[pltpu.VMEM((B, D), jnp.float32)],
        compiler_params=pltpu.CompilerParams(
            # must be "arbitrary": u_ref is filled at j == 0 and reused.
            dimension_semantics=("arbitrary",),
            vmem_limit_bytes=48 * 1024 * 1024),
    )(h, mask, a, bt, movie, out_bias)


# ----------------------------------------------------------------------------
# Glue: init, graph flattening to dense per-relation adjacency, padding,
# seed-set padding, cross-entropy loss, pure-JAX reference.
# ----------------------------------------------------------------------------
def xavier(key, shape, gain=1.0):
    fan_in, fan_out = shape[-2], shape[-1]
    lim = gain * np.sqrt(6.0 / (fan_in + fan_out))
    return jax.random.uniform(key, shape, jnp.float32, -lim, lim)


def build_dense_adj(edges, n_entity, n_relation):
    """edges: list of (src, dst, rel), already symmetrized + deduped.
    A_r[i, j] = 1/deg_r(i) for edge j->i of relation r (PyG mean aggregation)."""
    adj = np.zeros((n_relation, n_entity, n_entity), np.float32)
    for s, d, r in edges:
        adj[r, d, s] = 1.0
    deg = adj.sum(axis=2, keepdims=True)
    return adj / np.maximum(deg, 1.0)


def pad_seed_sets(seed_sets, max_s):
    B = len(seed_sets)
    idx = np.zeros((B, max_s), np.int32)
    mask = np.zeros((B, max_s), np.float32)
    for i, ss in enumerate(seed_sets):
        for j, v in enumerate(ss[:max_s]):
            idx[i, j] = v
            mask[i, j] = 1.0
    return jnp.asarray(idx), jnp.asarray(mask)


def pack_rgcn_inputs(adj, rgcn_w, rgcn_root, rgcn_bias, *, tm, tk, d_pad):
    """Fold relations into the contraction dim and zero-pad to tile multiples."""
    n_rel, n_ent, _ = adj.shape
    dim = rgcn_w.shape[-1]
    n_pad = _ceil_to(n_ent, tm)
    k = n_rel * n_pad
    k_pad = _ceil_to(k, tk)

    adj_p = np.zeros((n_rel, n_pad, n_pad), np.float32)
    adj_p[:, :n_ent, :n_ent] = adj
    adj_flat = adj_p.transpose(1, 0, 2).reshape(n_pad, k)       # [i, r*N+j]
    adj_flat = np.pad(adj_flat, ((0, 0), (0, k_pad - k)))

    w = np.zeros((n_rel, n_pad, d_pad), np.float32)
    w[:, :n_ent, :dim] = np.asarray(rgcn_w)
    w_flat = np.pad(w.reshape(k, d_pad), ((0, k_pad - k), (0, 0)))

    root = np.zeros((n_pad, d_pad), np.float32)
    root[:n_ent, :dim] = np.asarray(rgcn_root)
    bias = np.zeros((1, d_pad), np.float32)
    bias[0, :dim] = np.asarray(rgcn_bias).reshape(-1)

    return (jnp.asarray(adj_flat, jnp.bfloat16),
            jnp.asarray(w_flat, jnp.bfloat16),
            jnp.asarray(root), jnp.asarray(bias), n_pad)


def kecrs_forward(packed, seed_idx, seed_mask, labels, movie_num, m_pad):
    # 1) RGCN node features (Pallas kernel 1)
    nodes = rgcn_forward(packed["adj_flat"], packed["w_flat"],
                         packed["root"], packed["bias"])
    # seed-set gather (XLA); padded seed rows zeroed.
    # TODO(synk): fold the gather into kernel 2 via PrefetchScalarGridSpec +
    # pl.Element row blocks to avoid the (B,S,D) HBM round trip.
    h = (nodes[seed_idx] * seed_mask[:, :, None]).astype(jnp.bfloat16)
    movie = nodes[:m_pad].astype(jnp.bfloat16)

    # 2) self-attention user embedding + tiled movie scoring (Pallas kernel 2)
    scores_pad = user_scores(h, seed_mask, packed["attn_a"], packed["attn_bt"],
                             movie, packed["out_bias"])
    scores = scores_pad[:, :movie_num]

    # 3) cross-entropy loss (tiny; plain JAX)
    B = scores.shape[0]
    logz = jax.nn.logsumexp(scores, axis=-1)
    base_loss = jnp.mean(logz - scores[jnp.arange(B), labels])
    return dict(scores=scores, base_loss=base_loss, loss=base_loss)


def reference_forward(adj, rgcn_w, rgcn_root, rgcn_bias, attn_a, attn_b,
                      out_bias, seed_idx, seed_mask, movie_num):
    """Pure-JAX f32 reference of the same forward semantics."""
    nodes = (jnp.einsum('rij,rjd->id', jnp.asarray(adj), rgcn_w)
             + rgcn_root + rgcn_bias)
    h = nodes[seed_idx] * seed_mask[:, :, None]
    t = jnp.tanh(h @ attn_a)
    e = (t @ attn_b)[..., 0]
    e = jnp.where(seed_mask > 0, e, jnp.float32(-1e30))
    m = jnp.max(e, axis=-1, keepdims=True)
    p = jnp.exp(e - m) * seed_mask
    denom = jnp.sum(p, axis=-1, keepdims=True)
    attn = p / jnp.where(denom > 0, denom, 1.0)
    u = jnp.einsum('bs,bsd->bd', attn, h)
    return u @ nodes[:movie_num].T + out_bias


if __name__ == "__main__":
    # ---- small synthetic configuration (multi-tile once padded to 128s) ----
    n_entity = 300
    n_relation = 3
    dim = 32
    movie_entity_num = 200     # opt['item_num']
    batch = 2
    max_seeds = 8

    TM, TK, TMOV, D_PAD = 128, 256, 128, 128

    key = jax.random.PRNGKey(0)
    k1, k2, k3, k4, k5, k6 = jax.random.split(key, 6)

    # RGCNConv(n_entity, dim, n_relation): weight (R,N,D), root (N,D), bias (D,)
    rgcn_w = xavier(k1, (n_relation, n_entity, dim))
    rgcn_root = xavier(k2, (n_entity, dim))
    rgcn_bias = jnp.zeros((1, dim), jnp.float32)
    # SelfAttentionLayer(dim, dim): a (D, D), b (D, 1), xavier gain=1.414
    attn_a = xavier(k3, (dim, dim), gain=1.414)
    attn_b = xavier(k4, (dim, 1), gain=1.414)
    # output = nn.Linear(dim, movie_entity_num); only its bias is used
    out_bias = jax.random.uniform(k5, (1, movie_entity_num), jnp.float32,
                                  -0.1, 0.1)

    # synthetic KG: random (head, tail, rel) edges, symmetrized + deduped
    # (mirrors KECRS.flatten_graph)
    rng = np.random.RandomState(0)
    raw = set()
    for _ in range(600):
        h_ = int(rng.randint(0, n_entity))
        t_ = int(rng.randint(0, n_entity))
        r_ = int(rng.randint(0, n_relation))
        raw.add((h_, t_, r_))
        raw.add((t_, h_, r_))
    adj = build_dense_adj(sorted(raw), n_entity, n_relation)

    # seed sets (one non-empty, one empty to exercise the zeros(dim) path)
    seed_sets = [[1, 3, 5, 7, 120], []]
    seed_idx, seed_mask = pad_seed_sets(seed_sets, max_seeds)

    labels = jax.random.randint(k6, (batch,), 0, movie_entity_num)

    # pack / zero-pad params into TPU-friendly 128-multiple bf16/f32 shapes
    adj_flat, w_flat, root_p, bias_p, n_pad = pack_rgcn_inputs(
        adj, rgcn_w, rgcn_root, rgcn_bias, tm=TM, tk=TK, d_pad=D_PAD)
    m_pad = _ceil_to(movie_entity_num, TMOV)
    assert m_pad <= n_pad

    a_p = np.zeros((D_PAD, D_PAD), np.float32)
    a_p[:dim, :dim] = np.asarray(attn_a)
    bt_p = np.zeros((1, D_PAD), np.float32)
    bt_p[0, :dim] = np.asarray(attn_b)[:, 0]
    outb_p = np.zeros((1, m_pad), np.float32)
    outb_p[0, :movie_entity_num] = np.asarray(out_bias)[0]

    packed = dict(adj_flat=adj_flat, w_flat=w_flat, root=root_p, bias=bias_p,
                  attn_a=jnp.asarray(a_p, jnp.bfloat16),
                  attn_bt=jnp.asarray(bt_p),
                  out_bias=jnp.asarray(outb_p))

    out = kecrs_forward(packed, seed_idx, seed_mask, labels,
                        movie_entity_num, m_pad)
    jax.block_until_ready(out["scores"])
    jax.block_until_ready(out["loss"])

    # correctness check vs pure-JAX f32 reference (bf16-input tolerance)
    ref = np.asarray(reference_forward(adj, rgcn_w, rgcn_root, rgcn_bias,
                                       attn_a, attn_b, out_bias,
                                       seed_idx, seed_mask, movie_entity_num))
    got = np.asarray(out["scores"])
    rel_err = np.max(np.abs(got - ref)) / max(float(np.max(np.abs(ref))), 1e-3)

    assert out["scores"].shape == (batch, movie_entity_num)
    assert np.isfinite(np.asarray(out["loss"]))
    assert rel_err < 0.05, f"scores mismatch: rel_err={rel_err}"
    print("KERNEL_OK")
</pallas_src>

<mosaic_0001>
module attributes {stable_mosaic.version = 11 : i64} {
  func.func @rgcn_kernel(%arg0: i32, %arg1: i32, %arg2: memref<128x256xbf16, #tpu.memory_space<vmem>>, %arg3: memref<256x128xbf16, #tpu.memory_space<vmem>>, %arg4: memref<128x128xf32, #tpu.memory_space<vmem>>, %arg5: memref<1x128xf32, #tpu.memory_space<vmem>>, %arg6: memref<128x128xf32, #tpu.memory_space<vmem>>) attributes {dimension_semantics = [#tpu.dimension_semantics<parallel>, #tpu.dimension_semantics<arbitrary>], iteration_bounds = array<i64: 3, 5>, scalar_prefetch = 0 : i64, scratch_operands = 0 : i64, tpu.core_type = #tpu.core_type<tc>, window_params = [{transform_indices = @transform_0, window_bounds = array<i64: 128, 256>}, {transform_indices = @transform_1, window_bounds = array<i64: 256, 128>}, {transform_indices = @transform_2, window_bounds = array<i64: 128, 128>}, {pipeline_mode = #tpu.pipeline_mode<synchronous>, transform_indices = @transform_3, window_bounds = array<i64: 1, 128>}, {transform_indices = @transform_4, window_bounds = array<i64: 128, 128>}]} {
    %c0_i32 = arith.constant 0 : i32
    %0 = arith.cmpi eq, %arg1, %c0_i32 : i32
    %1 = arith.extui %0 : i1 to i32
    %c0_i32_0 = arith.constant 0 : i32
    %2 = arith.cmpi ne, %1, %c0_i32_0 : i32
    scf.if %2 {
      %c0_8 = arith.constant 0 : index
      %c0_9 = arith.constant 0 : index
      %9 = vector.load %arg4[%c0_8, %c0_9] : memref<128x128xf32, #tpu.memory_space<vmem>>, vector<128x128xf32>
      %c0_10 = arith.constant 0 : index
      %c0_11 = arith.constant 0 : index
      %10 = vector.load %arg5[%c0_10, %c0_11] : memref<1x128xf32, #tpu.memory_space<vmem>>, vector<1x128xf32>
      %11 = vector.broadcast %10 : vector<1x128xf32> to vector<128x128xf32>
      %12 = arith.addf %9, %11 : vector<128x128xf32>
      %c0_12 = arith.constant 0 : index
      %c0_13 = arith.constant 0 : index
      %13 = vector.load %arg6[%c0_12, %c0_13] : memref<128x128xf32, #tpu.memory_space<vmem>>, vector<128x128xf32>
      tpu.vector_store %arg6[%c0_12, %c0_13], %12 {strides = array<i32>} : memref<128x128xf32, #tpu.memory_space<vmem>>, vector<128x128xf32>,
    } else {
    }
    %c0 = arith.constant 0 : index
    %c0_1 = arith.constant 0 : index
    %3 = vector.load %arg6[%c0, %c0_1] : memref<128x128xf32, #tpu.memory_space<vmem>>, vector<128x128xf32>
    %c0_2 = arith.constant 0 : index
    %c0_3 = arith.constant 0 : index
    %4 = vector.load %arg2[%c0_2, %c0_3] : memref<128x256xbf16, #tpu.memory_space<vmem>>, vector<128x256xbf16>
    %c0_4 = arith.constant 0 : index
    %c0_5 = arith.constant 0 : index
    %5 = vector.load %arg3[%c0_4, %c0_5] : memref<256x128xbf16, #tpu.memory_space<vmem>>, vector<256x128xbf16>
    %cst = arith.constant dense<0.000000e+00> : vector<128x128xf32>
    %6 = tpu.matmul %4, %5, %cst {dimension_numbers = #tpu.dot_dimension_numbers<[1], [0], [0], [1], [0, 0, 1, 1], [], []>} : vector<128x256xbf16>, vector<256x128xbf16>, vector<128x128xf32> -> vector<128x128xf32>
    %7 = arith.addf %3, %6 : vector<128x128xf32>
    %c0_6 = arith.constant 0 : index
    %c0_7 = arith.constant 0 : index
    %8 = vector.load %arg6[%c0_6, %c0_7] : memref<128x128xf32, #tpu.memory_space<vmem>>, vector<128x128xf32>
    tpu.vector_store %arg6[%c0_6, %c0_7], %7 {strides = array<i32>} : memref<128x128xf32, #tpu.memory_space<vmem>>, vector<128x128xf32>,
    return
  }
  func.func @transform_0(%arg0: i32, %arg1: i32) -> (i32, i32) {
    %c0_i32 = arith.constant 0 : i32
    return %arg0, %arg1 : i32, i32
  }
  func.func @transform_1(%arg0: i32, %arg1: i32) -> (i32, i32) {
    %c0_i32 = arith.constant 0 : i32
    %c0_i32_0 = arith.constant 0 : i32
    return %arg1, %c0_i32 : i32, i32
  }
  func.func @transform_2(%arg0: i32, %arg1: i32) -> (i32, i32) {
    %c0_i32 = arith.constant 0 : i32
    %c0_i32_0 = arith.constant 0 : i32
    return %arg0, %c0_i32 : i32, i32
  }
  func.func @transform_3(%arg0: i32, %arg1: i32) -> (i32, i32) {
    %c0_i32 = arith.constant 0 : i32
    %c0_i32_0 = arith.constant 0 : i32
    %c0_i32_1 = arith.constant 0 : i32
    return %c0_i32, %c0_i32_0 : i32, i32
  }
  func.func @transform_4(%arg0: i32, %arg1: i32) -> (i32, i32) {
    %c0_i32 = arith.constant 0 : i32
    %c0_i32_0 = arith.constant 0 : i32
    return %arg0, %c0_i32 : i32, i32
  }
}

</mosaic_0001>

<llo_original>
// kernel: tpu_custom_call.1
$region0: #{tpu_custom_call.1}
  #allocation0 [shape = 'u32[]', space=smem, size = 0x4, offset = 0x4, fixed_abs, tag = 'smem constant byte address 0x4 - core index']
  #allocation1 [shape = 'u32[144,128]{1,0:T(1,128)}', space=vmem, size = 0x12000, scoped, tag = 'internal scratch']
  %s0 = inlined_call_operand.hbm [shape: bf16[384,1280], index: 0, kind: input, shape index: {}]
  %s1 = inlined_call_operand.hbm [shape: bf16[1280,128], index: 1, kind: input, shape index: {}]
  %s2 = inlined_call_operand.hbm [shape: f32[384,128], index: 2, kind: input, shape index: {}]
  %s3 = inlined_call_operand.vmem [shape: f32[1,128], index: 3, kind: input, shape index: {}]
  %s4 = inlined_call_operand.hbm [shape: f32[384,128], index: 4, kind: output, shape index: {}]
  %s5 = sld [smem:[#allocation0]]
  $region65: #{tpu_custom_call.1} parent=0
    _
  %s7 = ssub.s32 1, %s5
  %s8 = scalar_select 0, %s7, %s5
  $region1: #{tpu_custom_call.1} parent=0
    #allocation2 [shape = 'u8[131072]{0}', space=vmem, size = 0x20000, scoped, tag = 'input window, operand 0']
    #allocation3 [shape = 's32[2]{0}', space=sflag, size = 0x8, scoped, tag = 'scoped memory for tpu_custom_call.1']
    #allocation4 [shape = 's32[2]{0}', space=sflag, size = 0x8, scoped, tag = 'scoped memory for tpu_custom_call.1']
    #allocation5 [shape = 'u8[131072]{0}', space=vmem, size = 0x20000, scoped, tag = 'input window, operand 1']
    #allocation6 [shape = 's32[2]{0}', space=sflag, size = 0x8, scoped, tag = 'scoped memory for tpu_custom_call.1']
    #allocation7 [shape = 'u8[131072]{0}', space=vmem, size = 0x20000, scoped, tag = 'input window, operand 2']
    #allocation8 [shape = 'u8[131072]{0}', space=vmem, size = 0x20000, scoped, tag = 'output window, operand 0']
    %9 = vsyncpa [#allocation3], 0
    %s10 = scalar_lea.sflag [#allocation3], 1
    %11 = vsyncpa %s10, 0
    %12 = vsyncpa [#allocation6], 0
    %s13 = scalar_lea.sflag [#allocation6], 1
    %14 = vsyncpa %s13, 0
    %15 = vsyncpa [#allocation4], 0
    %s16 = scalar_lea.sflag [#allocation4], 1
    %17 = vsyncpa %s16, 0
    loop: start=0, step=1, limit=17
    $region2: #{tpu_custom_call.1} parent=1 // loop_pre_header
      _
    $region3: #{tpu_custom_call.1} parent=1 // loop_header
      %s19 = sphi 0, %s23
      %p20 = scmp.ge.s32.totalorder %s19, 17
      %s26 = sphi 0, %s38
      %s27 = sphi 0, %s34
      %s28 = sphi 0, %s26
      %s29 = sphi 0, %s27
      %s30 = sphi 0, %s28
      %s31 = sphi 0, %s29
      %s43 = sphi 0, %s45
      %s46 = sphi 0, %s43
      %s47 = sphi 0, %s46
      %s63 = sphi 0, %s47
      %s69 = sphi 0, %s71
      %s72 = sphi 0, %s69
      %s73 = sphi 0, %s72
      %s89 = sphi 0, %s73
      %s95 = sphi 0, %s97
      %s98 = sphi 0, %s95
      %s99 = sphi 0, %s98
      %s115 = sphi 0, %s99
      %s119 = sphi 0, %s119
      %s121 = sphi 0, %s119
      %s122 = sphi 0, %s121
      %s136 = sphi 0, %s122
      %s142 = sphi 0, %s144
      %s145 = sphi 0, %s142
      %s146 = sphi 0, %s145
      %s162 = sphi 0, %s146
    $region4: #{tpu_custom_call.1} parent=1 // loop_header_branch
      %22 = sbr.rel (%p20) target = $region8
    $region5: #{tpu_custom_call.1} parent=1 // loop_body
      %s24 = ssub.s32 %s19, 1
      %s25 = ssub.s32 %s19, 2
      %s32 = sadd.s32 1, %s27
      %p33 = scmp.ge.s32.totalorder %s32, 5
      %s34 = scalar_select %p33, 0, %s32
      %s35 = sadd.s32 1, %s26
      %s36 = scalar_select %p33, %s35, %s26
      %p37 = scmp.ge.s32.totalorder %s36, 3
      %s38 = scalar_select %p37, 0, %s36
      %s39 = ssub.s32 %s26, %s38
      %s40 = ssub.s32 %s27, %s34
      %s41 = sor.u32 %s39, %s40
      %p42 = scmp.eq.s32.totalorder %s41, 0
      %s44 = sadd.s32 %s43, 1
      %s45 = scalar_select %p42, %s43, %s44
      %p48 = pneg %p42
      %p49 = scmp.eq.s32.totalorder %s19, 14
      %p50 = por %p48, %p49
      %p51 = scmp.ne.s32.totalorder %s43, %s46
      %p52 = scmp.eq.s32.totalorder %s19, 0
      %p53 = por %p51, %p52
      %p54 = scmp.ne.s32.totalorder %s43, %s46
      %p55 = scmp.eq.s32.totalorder %s24, 14
      %p56 = por %p54, %p55
      %p57 = scmp.ne.s32.totalorder %s46, %s47
      %p58 = scmp.eq.s32.totalorder %s24, 0
      %p59 = por %p57, %p58
      %p60 = scmp.ne.s32.totalorder %s46, %s47
      %p61 = scmp.eq.s32.totalorder %s25, 14
      %p62 = por %p60, %p61
      %p64 = scmp.ne.s32.totalorder %s47, %s63
      %p65 = scmp.eq.s32.totalorder %s25, 0
      %p66 = por %p64, %p65
      %s67 = ssub.s32 %s27, %s34
      %p68 = scmp.eq.s32.totalorder %s67, 0
      %s70 = sadd.s32 %s69, 1
      %s71 = scalar_select %p68, %s69, %s70
      %p74 = pneg %p68
      %p75 = scmp.eq.s32.totalorder %s19, 14
      %p76 = por %p74, %p75
      %p77 = scmp.ne.s32.totalorder %s69, %s72
      %p78 = scmp.eq.s32.totalorder %s19, 0
      %p79 = por %p77, %p78
      %p80 = scmp.ne.s32.totalorder %s69, %s72
      %p81 = scmp.eq.s32.totalorder %s24, 14
      %p82 = por %p80, %p81
      %p83 = scmp.ne.s32.totalorder %s72, %s73
      %p84 = scmp.eq.s32.totalorder %s24, 0
      %p85 = por %p83, %p84
      %p86 = scmp.ne.s32.totalorder %s72, %s73
      %p87 = scmp.eq.s32.totalorder %s25, 14
      %p88 = por %p86, %p87
      %p90 = scmp.ne.s32.totalorder %s73, %s89
      %p91 = scmp.eq.s32.totalorder %s25, 0
      %p92 = por %p90, %p91
      %s93 = ssub.s32 %s26, %s38
      %p94 = scmp.eq.s32.totalorder %s93, 0
      %s96 = sadd.s32 %s95, 1
      %s97 = scalar_select %p94, %s95, %s96
      %p100 = pneg %p94
      %p101 = scmp.eq.s32.totalorder %s19, 14
      %p102 = por %p100, %p101
      %p103 = scmp.ne.s32.totalorder %s95, %s98
      %p104 = scmp.eq.s32.totalorder %s19, 0
      %p105 = por %p103, %p104
      %p106 = scmp.ne.s32.totalorder %s95, %s98
      %p107 = scmp.eq.s32.totalorder %s24, 14
      %p108 = por %p106, %p107
      %p109 = scmp.ne.s32.totalorder %s98, %s99
      %p110 = scmp.eq.s32.totalorder %s24, 0
      %p111 = por %p109, %p110
      %p112 = scmp.ne.s32.totalorder %s98, %s99
      %p113 = scmp.eq.s32.totalorder %s25, 14
      %p114 = por %p112, %p113
      %p116 = scmp.ne.s32.totalorder %s99, %s115
      %p117 = scmp.eq.s32.totalorder %s25, 0
      %p118 = por %p116, %p117
      %s120 = sadd.s32 %s119, 1
      %p123 = scmp.eq.s32.totalorder %s19, 14
      %p124 = scmp.ne.s32.totalorder %s119, %s121
      %p125 = scmp.eq.s32.totalorder %s19, 0
      %p126 = por %p124, %p125
      %p127 = scmp.ne.s32.totalorder %s119, %s121
      %p128 = scmp.eq.s32.totalorder %s24, 14
      %p129 = por %p127, %p128
      %p130 = scmp.ne.s32.totalorder %s121, %s122
      %p131 = scmp.eq.s32.totalorder %s24, 0
      %p132 = por %p130, %p131
      %p133 = scmp.ne.s32.totalorder %s121, %s122
      %p134 = scmp.eq.s32.totalorder %s25, 14
      %p135 = por %p133, %p134
      %p137 = scmp.ne.s32.totalorder %s122, %s136
      %p138 = scmp.eq.s32.totalorder %s25, 0
      %p139 = por %p137, %p138
      %s140 = ssub.s32 %s26, %s38
      %p141 = scmp.eq.s32.totalorder %s140, 0
      %s143 = sadd.s32 %s142, 1
      %s144 = scalar_select %p141, %s142, %s143
      %p147 = pneg %p141
      %p148 = scmp.eq.s32.totalorder %s19, 14
      %p149 = por %p147, %p148
      %p150 = scmp.ne.s32.totalorder %s142, %s145
      %p151 = scmp.eq.s32.totalorder %s19, 0
      %p152 = por %p150, %p151
      %p153 = scmp.ne.s32.totalorder %s142, %s145
      %p154 = scmp.eq.s32.totalorder %s24, 14
      %p155 = por %p153, %p154
      %p156 = scmp.ne.s32.totalorder %s145, %s146
      %p157 = scmp.eq.s32.totalorder %s24, 0
      %p158 = por %p156, %p157
      %p159 = scmp.ne.s32.totalorder %s145, %s146
      %p160 = scmp.eq.s32.totalorder %s25, 14
      %p161 = por %p159, %p160
      %p163 = scmp.ne.s32.totalorder %s146, %s162
      %p164 = scmp.eq.s32.totalorder %s25, 0
      %p165 = por %p163, %p164
      %p166 = scmp.le.s32.totalorder 1, %s19
      %p167 = scmp.lt.s32.totalorder %s19, 16
      %p168 = pnand %p166, %p167
      %p169 = pneg %p168
      // Predicated region
      $region9: #{tpu_custom_call.1} parent=5 // pred_check
        _
      $region10: #{tpu_custom_call.1} parent=5 // pred_check_branch
        %171 = sbr.rel (%p168) target = $region12
      $region11: #{tpu_custom_call.1} parent=5 // pred_region
        %s172 = ssub.s32 %s19, 1
        // Predicated region
        $region13: #{tpu_custom_call.1} parent=11 // pred_check
          %p173 = pneg %p132
        $region14: #{tpu_custom_call.1} parent=11 // pred_check_branch
          %175 = sbr.rel (%p173) target = $region16
        $region15: #{tpu_custom_call.1} parent=11 // pred_region
          _
        $region16: #{tpu_custom_call.1} parent=11 // pred_fallthru
          _
      $region12: #{tpu_custom_call.1} parent=5 // pred_fallthru
        _
      %p176 = scmp.lt.s32.totalorder %s19, 15
      // Predicated region
      $region17: #{tpu_custom_call.1} parent=5 // pred_check
        %p177 = pneg %p176
      $region18: #{tpu_custom_call.1} parent=5 // pred_check_branch
        %179 = sbr.rel (%p177) target = $region20
      $region19: #{tpu_custom_call.1} parent=5 // pred_region
        // Predicated region
        $region21: #{tpu_custom_call.1} parent=19 // pred_check
          %p180 = pneg %p53
        $region22: #{tpu_custom_call.1} parent=19 // pred_check_branch
          %182 = sbr.rel (%p180) target = $region24
        $region23: #{tpu_custom_call.1} parent=19 // pred_region
          %s183 = sand.u32 %s43, 1
          %s184 = scalar_lea.sflag [#allocation3], %s183
          %s185 = sand.u32 %s43, 1
          %s186 = smul.addr %s185, 128
          %s187 = scalar_lea.vmem [#allocation2], %s186
          %s188 = smul.u32 16, %s26
          %s189 = smul.u32 2, %s27
          %s191 = ssub.s32 2048, 2048
          %192 = vsyncadd %s184, %s191
          %s193 = smul.addr %s188, 10
          %s194 = sadd.s32 %s189, %s193
          %s195 = smul.addr %s194, 64
          %s196 = scalar_lea.hbm %s0, %s195
          %s197 = sshll.u32 %s187, 4
          %s198 = int_to_ptr.vmem [resolvable:$true] %s197
          %203 = dma.hbm_to_vmem [thread:$0]  %s196, 2048, %s198, %s184, 640, 128, 8
        $region24: #{tpu_custom_call.1} parent=19 // pred_fallthru
          _
        // Predicated region
        $region25: #{tpu_custom_call.1} parent=19 // pred_check
          %p204 = pneg %p79
        $region26: #{tpu_custom_call.1} parent=19 // pred_check_branch
          %206 = sbr.rel (%p204) target = $region28
        $region27: #{tpu_custom_call.1} parent=19 // pred_region
          %s207 = sand.u32 %s19, 1
          %s208 = scalar_lea.sflag [#allocation6], %s207
          %s209 = sand.u32 %s69, 1
          %s210 = smul.addr %s209, 128
          %s211 = scalar_lea.vmem [#allocation5], %s210
          %s212 = smul.u32 32, %s27
          %s214 = ssub.s32 2048, 2048
          %215 = vsyncadd %s208, %s214
          %s216 = smul.addr %s212, 64
          %s217 = scalar_lea.hbm %s1, %s216
          %s218 = sshll.u32 %s211, 4
          %s219 = int_to_ptr.vmem [resolvable:$true] %s218
          %224 = dma.hbm_to_vmem [thread:$0]  %s217, 2048, %s219, %s208, 64, 64, 4
        $region28: #{tpu_custom_call.1} parent=19 // pred_fallthru
          _
        // Predicated region
        $region29: #{tpu_custom_call.1} parent=19 // pred_check
          %p225 = pneg %p105
        $region30: #{tpu_custom_call.1} parent=19 // pred_check_branch
          %227 = sbr.rel (%p225) target = $region32
        $region31: #{tpu_custom_call.1} parent=19 // pred_region
          %s228 = sand.u32 %s19, 1
          %s229 = scalar_lea.sflag [#allocation6], %s228
          %s230 = sand.u32 %s95, 1
          %s231 = smul.addr %s230, 128
          %s232 = scalar_lea.vmem [#allocation7], %s231
          %s233 = smul.u32 16, %s26
          %s235 = ssub.s32 2048, 2048
          %236 = vsyncadd %s229, %s235
          %s237 = smul.addr %s233, 128
          %s238 = scalar_lea.hbm %s2, %s237
          %s239 = sshll.u32 %s232, 4
          %s240 = int_to_ptr.vmem [resolvable:$true] %s239
          %245 = dma.hbm_to_vmem [thread:$0]  %s238, 2048, %s240, %s229, 128, 128, 8
        $region32: #{tpu_custom_call.1} parent=19 // pred_fallthru
          _
      $region20: #{tpu_custom_call.1} parent=5 // pred_fallthru
        _
      %p246 = scmp.le.s32.totalorder 1, %s19
      %p247 = scmp.lt.s32.totalorder %s19, 16
      %p248 = pnand %p246, %p247
      %p249 = pneg %p248
      // Predicated region
      $region33: #{tpu_custom_call.1} parent=5 // pred_check
        _
      $region34: #{tpu_custom_call.1} parent=5 // pred_check_branch
        %251 = sbr.rel (%p248) target = $region36
      $region35: #{tpu_custom_call.1} parent=5 // pred_region
        %s252 = ssub.s32 %s19, 1
        %s253 = sand.u32 %s46, 1
        %s254 = scalar_lea.sflag [#allocation3], %s253
        %s255 = sand.u32 %s46, 1
        %s256 = smul.addr %s255, 128
        %s257 = scalar_lea.vmem [#allocation2], %s256
        // Predicated region
        $region37: #{tpu_custom_call.1} parent=35 // pred_check
          %p258 = pneg %p59
        $region38: #{tpu_custom_call.1} parent=35 // pred_check_branch
          %260 = sbr.rel (%p258) target = $region40
        $region39: #{tpu_custom_call.1} parent=35 // pred_region
          %261 = dma.done %s254, 2048
        $region40: #{tpu_custom_call.1} parent=35 // pred_fallthru
          _
        %s262 = sand.u32 %s24, 1
        %s263 = scalar_lea.sflag [#allocation6], %s262
        %s264 = sand.u32 %s72, 1
        %s265 = smul.addr %s264, 128
        %s266 = scalar_lea.vmem [#allocation5], %s265
        // Predicated region
        $region41: #{tpu_custom_call.1} parent=35 // pred_check
          %p267 = pneg %p85
        $region42: #{tpu_custom_call.1} parent=35 // pred_check_branch
          %269 = sbr.rel (%p267) target = $region44
        $region43: #{tpu_custom_call.1} parent=35 // pred_region
          %270 = dma.done %s263, 2048
        $region44: #{tpu_custom_call.1} parent=35 // pred_fallthru
          _
        %s271 = sand.u32 %s24, 1
        %s272 = scalar_lea.sflag [#allocation6], %s271
        %s273 = sand.u32 %s98, 1
        %s274 = smul.addr %s273, 128
        %s275 = scalar_lea.vmem [#allocation7], %s274
        // Predicated region
        $region45: #{tpu_custom_call.1} parent=35 // pred_check
          %p276 = pneg %p111
        $region46: #{tpu_custom_call.1} parent=35 // pred_check_branch
          %278 = sbr.rel (%p276) target = $region48
        $region47: #{tpu_custom_call.1} parent=35 // pred_region
          %279 = dma.done %s272, 2048
        $region48: #{tpu_custom_call.1} parent=35 // pred_fallthru
          _
        %s280 = sand.u32 %s46, 1
        %s281 = scalar_lea.sflag [#allocation3], %s280
        %s282 = sand.u32 %s46, 1
        %s283 = smul.addr %s282, 128
        %s284 = scalar_lea.vmem [#allocation2], %s283
        %p285 = pneg %p59
        %p286 = pneg %p56
        %s287 = sand.u32 %s24, 1
        %s288 = scalar_lea.sflag [#allocation6], %s287
        %s289 = sand.u32 %s72, 1
        %s290 = smul.addr %s289, 128
        %s291 = scalar_lea.vmem [#allocation5], %s290
        %p292 = pneg %p85
        %p293 = pneg %p82
        %s294 = sand.u32 %s24, 1
        %s295 = scalar_lea.sflag [#allocation6], %s294
        %s296 = sand.u32 %s98, 1
        %s297 = smul.addr %s296, 128
        %s298 = scalar_lea.vmem [#allocation7], %s297
        %p299 = pneg %p111
        %p300 = pneg %p108
        %p301 = pneg %p132
        %p302 = pneg %p129
        %p303 = pneg %p158
        %p304 = pneg %p155
        %s305 = sand.u32 %s145, 1
        %s306 = scalar_lea.sflag [#allocation4], %s305
        %s307 = sand.u32 %s145, 1
        %s308 = smul.addr %s307, 128
        %s309 = scalar_lea.vmem [#allocation8], %s308
        %s310 = smul.u32 16, %s28
        %s311 = smul.u32 2, %s29
        %s312 = smul.u32 32, %s29
        %s313 = smul.u32 16, %s28
        %s314 = smul.u32 16, %s28
        %p316 = scmp.eq.s32.totalorder %s29, 0
        // Predicated region
        $region49: #{tpu_custom_call.1} parent=35 // pred_check
          %p317 = pneg %p316
        $region50: #{tpu_custom_call.1} parent=35 // pred_check_branch
          %319 = sbr.rel (%p317) target = $region52
        $region51: #{tpu_custom_call.1} parent=35 // pred_region
          %v320 = vld [vmem:[%s275] sm:$0xff]
          %v321 = vld [vmem:[%s275 + $0x8] sm:$0xff]
          %v322 = vld [vmem:[%s275 + $0x10] sm:$0xff]
          %v323 = vld [vmem:[%s275 + $0x18] sm:$0xff]
          %v324 = vld [vmem:[%s275 + $0x20] sm:$0xff]
          %v325 = vld [vmem:[%s275 + $0x28] sm:$0xff]
          %v326 = vld [vmem:[%s275 + $0x30] sm:$0xff]
          %v327 = vld [vmem:[%s275 + $0x38] sm:$0xff]
          %v328 = vld [vmem:[%s275 + $0x40] sm:$0xff]
          %v329 = vld [vmem:[%s275 + $0x48] sm:$0xff]
          %v330 = vld [vmem:[%s275 + $0x50] sm:$0xff]
          %v331 = vld [vmem:[%s275 + $0x58] sm:$0xff]
          %v332 = vld [vmem:[%s275 + $0x60] sm:$0xff]
          %v333 = vld [vmem:[%s275 + $0x68] sm:$0xff]
          %v334 = vld [vmem:[%s275 + $0x70] sm:$0xff]
          %v335 = vld [vmem:[%s275 + $0x78] sm:$0xff]
          %v336 = vld [vmem:[%s3] sm:$0x1]
          %v338 = vlaneseq
          %v339 = vshrl.u32 %v338, 7
          %v340 = vsub.s32 0, %v339
          %v341 = vrot.slane %v336, %v340
          %v343 = vadd.f32 %v320, %v341
          %v344 = vadd.f32 %v321, %v341
          %v345 = vadd.f32 %v322, %v341
          %v346 = vadd.f32 %v323, %v341
          %v347 = vadd.f32 %v324, %v341
          %v348 = vadd.f32 %v325, %v341
          %v349 = vadd.f32 %v326, %v341
          %v350 = vadd.f32 %v327, %v341
          %v351 = vadd.f32 %v328, %v341
          %v352 = vadd.f32 %v329, %v341
          %v353 = vadd.f32 %v330, %v341
          %v354 = vadd.f32 %v331, %v341
          %v355 = vadd.f32 %v332, %v341
          %v356 = vadd.f32 %v333, %v341
          %v357 = vadd.f32 %v334, %v341
          %v358 = vadd.f32 %v335, %v341
          %359 = vst [vmem:[%s309] sm:$0xff] %v343
          %360 = vst [vmem:[%s309 + $0x8] sm:$0xff] %v344
          %361 = vst [vmem:[%s309 + $0x10] sm:$0xff] %v345
          %362 = vst [vmem:[%s309 + $0x18] sm:$0xff] %v346
          %363 = vst [vmem:[%s309 + $0x20] sm:$0xff] %v347
          %364 = vst [vmem:[%s309 + $0x28] sm:$0xff] %v348
          %365 = vst [vmem:[%s309 + $0x30] sm:$0xff] %v349
          %366 = vst [vmem:[%s309 + $0x38] sm:$0xff] %v350
          %367 = vst [vmem:[%s309 + $0x40] sm:$0xff] %v351
          %368 = vst [vmem:[%s309 + $0x48] sm:$0xff] %v352
          %369 = vst [vmem:[%s309 + $0x50] sm:$0xff] %v353
          %370 = vst [vmem:[%s309 + $0x58] sm:$0xff] %v354
          %371 = vst [vmem:[%s309 + $0x60] sm:$0xff] %v355
          %372 = vst [vmem:[%s309 + $0x68] sm:$0xff] %v356
          %373 = vst [vmem:[%s309 + $0x70] sm:$0xff] %v357
          %374 = vst [vmem:[%s309 + $0x78] sm:$0xff] %v358
        $region52: #{tpu_custom_call.1} parent=35 // pred_fallthru
          _
        %v375 = vld [vmem:[%s309] sm:$0xff]
        %v376 = vld [vmem:[%s309 + $0x8] sm:$0xff]
        %v377 = vld [vmem:[%s309 + $0x10] sm:$0xff]
        %v378 = vld [vmem:[%s309 + $0x18] sm:$0xff]
        %v379 = vld [vmem:[%s309 + $0x20] sm:$0xff]
        %v380 = vld [vmem:[%s309 + $0x28] sm:$0xff]
        %v381 = vld [vmem:[%s309 + $0x30] sm:$0xff]
        %v382 = vld [vmem:[%s309 + $0x38] sm:$0xff]
        %v383 = vld [vmem:[%s309 + $0x40] sm:$0xff]
        %v384 = vld [vmem:[%s309 + $0x48] sm:$0xff]
        %v385 = vld [vmem:[%s309 + $0x50] sm:$0xff]
        %v386 = vld [vmem:[%s309 + $0x58] sm:$0xff]
        %v387 = vld [vmem:[%s309 + $0x60] sm:$0xff]
        %v388 = vld [vmem:[%s309 + $0x68] sm:$0xff]
        %v389 = vld [vmem:[%s309 + $0x70] sm:$0xff]
        %v390 = vld [vmem:[%s309 + $0x78] sm:$0xff]
        %v391 = vld [vmem:[%s257] sm:$0xff]
        %v392 = vld [vmem:[%s257 + $0x8] sm:$0xff]
        %v393 = vld [vmem:[%s257 + $0x10] sm:$0xff]
        %v394 = vld [vmem:[%s257 + $0x18] sm:$0xff]
        %v395 = vld [vmem:[%s257 + $0x20] sm:$0xff]
        %v396 = vld [vmem:[%s257 + $0x28] sm:$0xff]
        %v397 = vld [vmem:[%s257 + $0x30] sm:$0xff]
        %v398 = vld [vmem:[%s257 + $0x38] sm:$0xff]
        %v399 = vld [vmem:[%s257 + $0x40] sm:$0xff]
        %v400 = vld [vmem:[%s257 + $0x48] sm:$0xff]
        %v401 = vld [vmem:[%s257 + $0x50] sm:$0xff]
        %v402 = vld [vmem:[%s257 + $0x58] sm:$0xff]
        %v403 = vld [vmem:[%s257 + $0x60] sm:$0xff]
        %v404 = vld [vmem:[%s257 + $0x68] sm:$0xff]
        %v405 = vld [vmem:[%s257 + $0x70] sm:$0xff]
        %v406 = vld [vmem:[%s257 + $0x78] sm:$0xff]
        %v407 = vld [vmem:[%s266] sm:$0xf]
        %v408 = vld [vmem:[%s266 + $0x4] sm:$0xf]
        %v409 = vld [vmem:[%s266 + $0x8] sm:$0xf]
        %v410 = vld [vmem:[%s266 + $0xc] sm:$0xf]
        %v411 = vld [vmem:[%s266 + $0x10] sm:$0xf]
        %v412 = vld [vmem:[%s266 + $0x14] sm:$0xf]
        %v413 = vld [vmem:[%s266 + $0x18] sm:$0xf]
        %v414 = vld [vmem:[%s266 + $0x1c] sm:$0xf]
        %v415 = vld [vmem:[%s266 + $0x20] sm:$0xf]
        %v416 = vld [vmem:[%s266 + $0x24] sm:$0xf]
        %v417 = vld [vmem:[%s266 + $0x28] sm:$0xf]
        %v418 = vld [vmem:[%s266 + $0x2c] sm:$0xf]
        %v419 = vld [vmem:[%s266 + $0x30] sm:$0xf]
        %v420 = vld [vmem:[%s266 + $0x34] sm:$0xf]
        %v421 = vld [vmem:[%s266 + $0x38] sm:$0xf]
        %v422 = vld [vmem:[%s266 + $0x3c] sm:$0xf]
        %v423 = vld [vmem:[%s266 + $0x40] sm:$0xf]
        %v424 = vld [vmem:[%s266 + $0x44] sm:$0xf]
        %v425 = vld [vmem:[%s266 + $0x48] sm:$0xf]
        %v426 = vld [vmem:[%s266 + $0x4c] sm:$0xf]
        %v427 = vld [vmem:[%s266 + $0x50] sm:$0xf]
        %v428 = vld [vmem:[%s266 + $0x54] sm:$0xf]
        %v429 = vld [vmem:[%s266 + $0x58] sm:$0xf]
        %v430 = vld [vmem:[%s266 + $0x5c] sm:$0xf]
        %v431 = vld [vmem:[%s266 + $0x60] sm:$0xf]
        %v432 = vld [vmem:[%s266 + $0x64] sm:$0xf]
        %v433 = vld [vmem:[%s266 + $0x68] sm:$0xf]
        %v434 = vld [vmem:[%s266 + $0x6c] sm:$0xf]
        %v435 = vld [vmem:[%s266 + $0x70] sm:$0xf]
        %v436 = vld [vmem:[%s266 + $0x74] sm:$0xf]
        %v437 = vld [vmem:[%s266 + $0x78] sm:$0xf]
        %v438 = vld [vmem:[%s266 + $0x7c] sm:$0xf]
        %v455 = vunpack.c.l.b16 %v391
        %v456 = vunpack.c.h.b16 %v391
        %v457 = vunpack.c.l.b16 %v392
        %v458 = vunpack.c.h.b16 %v392
        %v459 = vunpack.c.l.b16 %v393
        %v460 = vunpack.c.h.b16 %v393
        %v461 = vunpack.c.l.b16 %v394
        %v462 = vunpack.c.h.b16 %v394
        %v463 = vunpack.c.l.b16 %v395
        %v464 = vunpack.c.h.b16 %v395
        %v465 = vunpack.c.l.b16 %v396
        %v466 = vunpack.c.h.b16 %v396
        %v467 = vunpack.c.l.b16 %v397
        %v468 = vunpack.c.h.b16 %v397
        %v469 = vunpack.c.l.b16 %v398
        %v470 = vunpack.c.h.b16 %v398
        %v471 = vunpack.c.l.b16 %v399
        %v472 = vunpack.c.h.b16 %v399
        %v473 = vunpack.c.l.b16 %v400
        %v474 = vunpack.c.h.b16 %v400
        %v475 = vunpack.c.l.b16 %v401
        %v476 = vunpack.c.h.b16 %v401
        %v477 = vunpack.c.l.b16 %v402
        %v478 = vunpack.c.h.b16 %v402
        %v479 = vunpack.c.l.b16 %v403
        %v480 = vunpack.c.h.b16 %v403
        %v481 = vunpack.c.l.b16 %v404
        %v482 = vunpack.c.h.b16 %v404
        %v483 = vunpack.c.l.b16 %v405
        %v484 = vunpack.c.h.b16 %v405
        %v485 = vunpack.c.l.b16 %v406
        %v486 = vunpack.c.h.b16 %v406
        %v487 = vpack.c.b16 %v457, %v455
        %v488 = vpack.c.b16 %v458, %v456
        %v489 = vpack.c.b16 %v461, %v459
        %v490 = vpack.c.b16 %v462, %v460
        %v491 = vpack.c.b16 %v465, %v463
        %v492 = vpack.c.b16 %v466, %v464
        %v493 = vpack.c.b16 %v469, %v467
        %v494 = vpack.c.b16 %v470, %v468
        %v495 = vpack.c.b16 %v473, %v471
        %v496 = vpack.c.b16 %v474, %v472
        %v497 = vpack.c.b16 %v477, %v475
        %v498 = vpack.c.b16 %v478, %v476
        %v499 = vpack.c.b16 %v481, %v479
        %v500 = vpack.c.b16 %v482, %v480
        %v501 = vpack.c.b16 %v485, %v483
        %v502 = vpack.c.b16 %v486, %v484
        %v551 = vunpack.c.l.b16 %v407
        %v552 = vunpack.c.l.b16 %v408
        %v553 = vunpack.c.l.b16 %v409
        %v554 = vunpack.c.l.b16 %v410
        %v555 = vunpack.c.l.b16 %v411
        %v556 = vunpack.c.l.b16 %v412
        %v557 = vunpack.c.l.b16 %v413
        %v558 = vunpack.c.l.b16 %v414
        %v559 = vunpack.c.l.b16 %v415
        %v560 = vunpack.c.l.b16 %v416
        %v561 = vunpack.c.l.b16 %v417
        %v562 = vunpack.c.l.b16 %v418
        %v563 = vunpack.c.l.b16 %v419
        %v564 = vunpack.c.l.b16 %v420
        %v565 = vunpack.c.l.b16 %v421
        %v566 = vunpack.c.l.b16 %v422
        %v567 = vunpack.c.l.b16 %v423
        %v568 = vunpack.c.l.b16 %v424
        %v569 = vunpack.c.l.b16 %v425
        %v570 = vunpack.c.l.b16 %v426
        %v571 = vunpack.c.l.b16 %v427
        %v572 = vunpack.c.l.b16 %v428
        %v573 = vunpack.c.l.b16 %v429
        %v574 = vunpack.c.l.b16 %v430
        %v575 = vunpack.c.l.b16 %v431
        %v576 = vunpack.c.l.b16 %v432
        %v577 = vunpack.c.l.b16 %v433
        %v578 = vunpack.c.l.b16 %v434
        %v579 = vunpack.c.l.b16 %v435
        %v580 = vunpack.c.l.b16 %v436
        %v581 = vunpack.c.l.b16 %v437
        %v582 = vunpack.c.l.b16 %v438
        %v583 = vpack.c.b16 %v552, %v551
        %v584 = vpack.c.b16 %v554, %v553
        %v585 = vpack.c.b16 %v556, %v555
        %v586 = vpack.c.b16 %v558, %v557
        %v587 = vpack.c.b16 %v560, %v559
        %v588 = vpack.c.b16 %v562, %v561
        %v589 = vpack.c.b16 %v564, %v563
        %v590 = vpack.c.b16 %v566, %v565
        %v591 = vpack.c.b16 %v568, %v567
        %v592 = vpack.c.b16 %v570, %v569
        %v593 = vpack.c.b16 %v572, %v571
        %v594 = vpack.c.b16 %v574, %v573
        %v595 = vpack.c.b16 %v576, %v575
        %v596 = vpack.c.b16 %v578, %v577
        %v597 = vpack.c.b16 %v580, %v579
        %v598 = vpack.c.b16 %v582, %v581
        %615 = vmatprep.subr.bf16.mxu0 0
        %616 = vmatpush1.bf16.msra.mxu0 %v590
        %617 = vmatprep.subr.bf16.mxu0 0
        %618 = vmatpush1.bf16.msra.mxu0 %v589
        %619 = vmatprep.subr.bf16.mxu0 0
        %620 = vmatpush1.bf16.msra.mxu0 %v588
        %621 = vmatprep.subr.bf16.mxu0 0
        %622 = vmatpush1.bf16.msra.mxu0 %v587
        %623 = vmatprep.subr.bf16.mxu0 0
        %624 = vmatpush1.bf16.msra.mxu0 %v586
        %625 = vmatprep.subr.bf16.mxu0 0
        %626 = vmatpush1.bf16.msra.mxu0 %v585
        %627 = vmatprep.subr.bf16.mxu0 0
        %628 = vmatpush1.bf16.msra.mxu0 %v584
        %629 = vmatprep.subr.bf16.mxu0 0
        %630 = vmatpush1.bf16.msra.mxu0 %v583
        %631 = vmatprep.subr.bf16.mxu0 0
        %632 = vmatpush2.bf16.msra.mxu0 %v598
        %633 = vmatprep.subr.bf16.mxu0 0
        %634 = vmatpush2.bf16.msra.mxu0 %v597
        %635 = vmatprep.subr.bf16.mxu0 0
        %636 = vmatpush2.bf16.msra.mxu0 %v596
        %637 = vmatprep.subr.bf16.mxu0 0
        %638 = vmatpush2.bf16.msra.mxu0 %v595
        %639 = vmatprep.subr.bf16.mxu0 0
        %640 = vmatpush2.bf16.msra.mxu0 %v594
        %641 = vmatprep.subr.bf16.mxu0 0
        %642 = vmatpush2.bf16.msra.mxu0 %v593
        %643 = vmatprep.subr.bf16.mxu0 0
        %644 = vmatpush2.bf16.msra.mxu0 %v592
        %645 = vmatprep.subr.bf16.mxu0 0
        %646 = vmatpush2.bf16.msra.mxu0 %v591
        %647 = vmatprep.mubr.bf16.mxu0 %v488
        %648 = vmatmul.mubr.bf16.gmra.mxu0 %v487
        %v649 = vpop.f32.mrf.mxu0
        %v650 = vadd.f32 0.0, %v649
        %v651 = vpop.f32.mrf.mxu0
        %v652 = vpop.f32.mrf.mxu0
        %v653 = vadd.f32 0.0, %v652
        %v654 = vpop.f32.mrf.mxu0
        %655 = vmatprep.mubr.bf16.mxu0 %v490
        %656 = vmatmul.mubr.bf16.gmra.mxu0 %v489
        %v657 = vpop.f32.mrf.mxu0
        %v658 = vadd.f32 0.0, %v657
        %v659 = vpop.f32.mrf.mxu0
        %v660 = vpop.f32.mrf.mxu0
        %v661 = vadd.f32 0.0, %v660
        %v662 = vpop.f32.mrf.mxu0
        %663 = vmatprep.mubr.bf16.mxu0 %v492
        %664 = vmatmul.mubr.bf16.gmra.mxu0 %v491
        %v665 = vpop.f32.mrf.mxu0
        %v666 = vadd.f32 0.0, %v665
        %v667 = vpop.f32.mrf.mxu0
        %v668 = vpop.f32.mrf.mxu0
        %v669 = vadd.f32 0.0, %v668
        %v670 = vpop.f32.mrf.mxu0
        %671 = vmatprep.mubr.bf16.mxu0 %v494
        %672 = vmatmul.mubr.bf16.gmra.mxu0 %v493
        %v673 = vpop.f32.mrf.mxu0
        %v674 = vadd.f32 0.0, %v673
        %v675 = vpop.f32.mrf.mxu0
        %v676 = vpop.f32.mrf.mxu0
        %v677 = vadd.f32 0.0, %v676
        %v678 = vpop.f32.mrf.mxu0
        %679 = vmatprep.mubr.bf16.mxu0 %v496
        %680 = vmatmul.mubr.bf16.gmra.mxu0 %v495
        %v681 = vpop.f32.mrf.mxu0
        %v682 = vadd.f32 0.0, %v681
        %v683 = vpop.f32.mrf.mxu0
        %v684 = vpop.f32.mrf.mxu0
        %v685 = vadd.f32 0.0, %v684
        %v686 = vpop.f32.mrf.mxu0
        %687 = vmatprep.mubr.bf16.mxu0 %v498
        %688 = vmatmul.mubr.bf16.gmra.mxu0 %v497
        %v689 = vpop.f32.mrf.mxu0
        %v690 = vadd.f32 0.0, %v689
        %v691 = vpop.f32.mrf.mxu0
        %v692 = vpop.f32.mrf.mxu0
        %v693 = vadd.f32 0.0, %v692
        %v694 = vpop.f32.mrf.mxu0
        %695 = vmatprep.mubr.bf16.mxu0 %v500
        %696 = vmatmul.mubr.bf16.gmra.mxu0 %v499
        %v697 = vpop.f32.mrf.mxu0
        %v698 = vadd.f32 0.0, %v697
        %v699 = vpop.f32.mrf.mxu0
        %v700 = vpop.f32.mrf.mxu0
        %v701 = vadd.f32 0.0, %v700
        %v702 = vpop.f32.mrf.mxu0
        %703 = vmatprep.mubr.bf16.mxu0 %v502
        %704 = vmatmul.mubr.bf16.gmra.mxu0 %v501
        %v705 = vpop.f32.mrf.mxu0
        %v706 = vadd.f32 0.0, %v705
        %v707 = vpop.f32.mrf.mxu0
        %v708 = vpop.f32.mrf.mxu0
        %v709 = vadd.f32 0.0, %v708
        %v710 = vpop.f32.mrf.mxu0
        %711 = vdwg.mxu0
        %v712 = vadd.f32 %v375, %v650
        %v713 = vadd.f32 %v376, %v653
        %v714 = vadd.f32 %v377, %v658
        %v715 = vadd.f32 %v378, %v661
        %v716 = vadd.f32 %v379, %v666
        %v717 = vadd.f32 %v380, %v669
        %v718 = vadd.f32 %v381, %v674
        %v719 = vadd.f32 %v382, %v677
        %v720 = vadd.f32 %v383, %v682
        %v721 = vadd.f32 %v384, %v685
        %v722 = vadd.f32 %v385, %v690
        %v723 = vadd.f32 %v386, %v693
        %v724 = vadd.f32 %v387, %v698
        %v725 = vadd.f32 %v388, %v701
        %v726 = vadd.f32 %v389, %v706
        %v727 = vadd.f32 %v390, %v709
        %728 = vst [vmem:[%s309] sm:$0xff] %v712
        %729 = vst [vmem:[%s309 + $0x8] sm:$0xff] %v713
        %730 = vst [vmem:[%s309 + $0x10] sm:$0xff] %v714
        %731 = vst [vmem:[%s309 + $0x18] sm:$0xff] %v715
        %732 = vst [vmem:[%s309 + $0x20] sm:$0xff] %v716
        %733 = vst [vmem:[%s309 + $0x28] sm:$0xff] %v717
        %734 = vst [vmem:[%s309 + $0x30] sm:$0xff] %v718
        %735 = vst [vmem:[%s309 + $0x38] sm:$0xff] %v719
        %736 = vst [vmem:[%s309 + $0x40] sm:$0xff] %v720
        %737 = vst [vmem:[%s309 + $0x48] sm:$0xff] %v721
        %738 = vst [vmem:[%s309 + $0x50] sm:$0xff] %v722
        %739 = vst [vmem:[%s309 + $0x58] sm:$0xff] %v723
        %740 = vst [vmem:[%s309 + $0x60] sm:$0xff] %v724
        %741 = vst [vmem:[%s309 + $0x68] sm:$0xff] %v725
        %742 = vst [vmem:[%s309 + $0x70] sm:$0xff] %v726
        %743 = vst [vmem:[%s309 + $0x78] sm:$0xff] %v727
        %s744 = sand.u32 %s145, 1
        %s745 = scalar_lea.sflag [#allocation4], %s744
        %s746 = sand.u32 %s145, 1
        %s747 = smul.addr %s746, 128
        %s748 = scalar_lea.vmem [#allocation8], %s747
        // Predicated region
        $region53: #{tpu_custom_call.1} parent=35 // pred_check
          %p749 = pneg %p155
        $region54: #{tpu_custom_call.1} parent=35 // pred_check_branch
          %751 = sbr.rel (%p749) target = $region56
        $region55: #{tpu_custom_call.1} parent=35 // pred_region
          %s752 = smul.u32 16, %s28
          %s754 = ssub.s32 2048, 2048
          %755 = vsyncadd %s745, %s754
          %s756 = smul.addr %s752, 128
          %s757 = scalar_lea.hbm %s4, %s756
          %s758 = sshll.u32 %s748, 4
          %s759 = int_to_ptr.vmem [resolvable:$true] %s758
          %764 = dma.vmem_to_hbm [thread:$0]  %s759, 2048, %s757, %s745, 128, 128, 8
        $region56: #{tpu_custom_call.1} parent=35 // pred_fallthru
          _
      $region36: #{tpu_custom_call.1} parent=5 // pred_fallthru
        _
      %p765 = scmp.le.s32.totalorder 2, %s19
      // Predicated region
      $region57: #{tpu_custom_call.1} parent=5 // pred_check
        %p766 = pneg %p765
      $region58: #{tpu_custom_call.1} parent=5 // pred_check_branch
        %768 = sbr.rel (%p766) target = $region60
      $region59: #{tpu_custom_call.1} parent=5 // pred_region
        %s769 = ssub.s32 %s19, 2
        // Predicated region
        $region61: #{tpu_custom_call.1} parent=59 // pred_check
          %p770 = pneg %p161
        $region62: #{tpu_custom_call.1} parent=59 // pred_check_branch
          %772 = sbr.rel (%p770) target = $region64
        $region63: #{tpu_custom_call.1} parent=59 // pred_region
          %s773 = sand.u32 %s146, 1
          %s774 = scalar_lea.sflag [#allocation4], %s773
          %s775 = sand.u32 %s146, 1
          %s776 = smul.addr %s775, 128
          %s777 = scalar_lea.vmem [#allocation8], %s776
          %778 = dma.done %s774, 2048
        $region64: #{tpu_custom_call.1} parent=59 // pred_fallthru
          _
      $region60: #{tpu_custom_call.1} parent=5 // pred_fallthru
        _
    $region6: #{tpu_custom_call.1} parent=1 // loop_footer
      %s23 = sadd.s32 1, %s19
    $region7: #{tpu_custom_call.1} parent=1 // loop_footer_branch
      %18 = sbr.rel target = $region3
    $region8: #{tpu_custom_call.1} parent=1 // loop_exit
      _
    %779 = vsyncpa [#allocation3], 1
    %s780 = scalar_lea.sflag [#allocation3], 1
    %781 = vsyncpa %s780, 1
    %782 = vsyncpa [#allocation6], 1
    %s783 = scalar_lea.sflag [#allocation6], 1
    %784 = vsyncpa %s783, 1
    %785 = vsyncpa [#allocation4], 1
    %s786 = scalar_lea.sflag [#allocation4], 1
    %787 = vsyncpa %s786, 1

</llo_original>
